<compile_context>
chip_gen: v6e
topology: v6e:2x2x1
jax: 0.10.0
libtpu: 0.0.40
codegen_flags: <defaults>
</compile_context>

<pallas_src>
import functools

import jax
import jax.numpy as jnp
from jax.experimental import pallas as pl
from jax.experimental.pallas import tpu as pltpu


def _ffn_kernel(x_ref, w1_ref, w2_ref, o_ref, acc_ref, *, compute_dtype, approx_recip):
    # x_ref  : (tm, d_model)   row tile of activations (caller dtype)
    # w1_ref : (d_model, tf)   slice of first weight (compute dtype)
    # w2_ref : (tf, d_model)   slice of second weight (compute dtype)
    # o_ref  : (tm, d_model)   output row tile (caller dtype)
    # acc_ref: (tm, d_model)   f32 accumulator, resident across the d_ff axis
    f = pl.program_id(1)

    @pl.when(f == 0)
    def _():
        acc_ref[...] = jnp.zeros_like(acc_ref)

    # In-kernel cast (no standalone HBM convert pass in the wrapper).
    xb = x_ref[...].astype(compute_dtype)

    # First projection on the MXU, f32 accumulation.
    h = jnp.dot(xb, w1_ref[...], preferred_element_type=jnp.float32)

    # SiLU on the f32 intermediate, EUP-friendly: exp -> EUP, reciprocal -> EUP
    # (approx on the bf16 path), multiply -> VPU; all hidden under MXU work.
    h = h * pl.reciprocal(1.0 + jnp.exp(-h), approx=approx_recip)

    # Dropout (eval/inference mode) == identity.

    # Partial second projection for this d_ff slice, accumulated in f32.
    acc_ref[...] += jnp.dot(h.astype(w2_ref.dtype), w2_ref[...],
                            preferred_element_type=jnp.float32)

    @pl.when(f == pl.num_programs(1) - 1)
    def _():
        o_ref[...] = acc_ref[...].astype(o_ref.dtype)


def _tpu_info():
    try:
        kind = jax.devices()[0].device_kind.lower()
    except Exception:
        kind = ""
    try:
        vmem_bytes = int(pltpu.get_tpu_info().vmem_capacity_bytes)
    except Exception:
        vmem_bytes = 64 * 1024 * 1024  # conservative (v7x per-TC figure)
    return kind, vmem_bytes


def _pick_tiles(n, d_model, d_ff, io_itemsize, compute_itemsize, tm, tf):
    """Pick MXU/lane-aligned (tm, tf) against the chip's VMEM budget."""
    kind, vmem_bytes = _tpu_info()
    budget = vmem_bytes // 2                  # headroom for compiler scratch/spills
    sublane = max(8, 32 // io_itemsize)       # 8 for f32 I/O, 16 for bf16 I/O
    is_v7x = vmem_bytes <= 64 * 1024 * 1024   # 64 MiB/TC class budget

    # --- row tile: FLOPs per weight byte ~= tm (generation-aware cap) ---
    if "v5" in kind:
        tm_cap = 512        # ~240 FLOPs/B needed -> already compute-bound at 256-512
    elif "v6" in kind:
        tm_cap = 1024       # ~650-700 FLOPs/B needed (918 TF/s vs ~1.4 TB/s HBM)
    else:
        tm_cap = 512        # v7x (tight 64 MiB VMEM) or unknown

    if tm is None:
        tm = tm_cap
    tm = min(int(tm), n)

    # v7x: keep both TensorCores busy -> at least 2 programs on the parallel axis.
    if is_v7x and n >= 2 * sublane:
        tm = min(tm, max(sublane, (n // 2 // sublane) * sublane))

    # Sublane-align any proper row tile (guardrail for user-supplied tm too).
    if tm < n:
        tm = max(sublane, (tm // sublane) * sublane)

    # Fixed VMEM (independent of tf): x tile (2 bufs) + out tile (2 bufs)
    # + f32 accumulator + in-kernel compute-dtype copy of the x tile.
    def fixed_bytes(tm_):
        return tm_ * d_model * (4 * io_itemsize + 4 + compute_itemsize)

    while fixed_bytes(tm) > budget and tm > sublane:
        tm = max(sublane, (tm // 2 // sublane) * sublane)
    fixed = fixed_bytes(tm)
    if fixed > budget:
        raise ValueError(
            f"FFN row tile does not fit VMEM: tm={tm}, d_model={d_model}, "
            f"fixed={fixed}B > budget={budget}B")

    # Per-d_ff-column VMEM: two weight slices (double-buffered each)
    # + f32 h + f32 SiLU temporary + compute-dtype copy of h.
    per_tf = 4 * d_model * compute_itemsize + tm * (8 + compute_itemsize)

    if tf is None:
        tf = (budget - fixed) // per_tf
        tf = min(tf, 2048)                 # cap: keep f-steps for DMA/MXU overlap
    tf = max(1, min(int(tf), d_ff))

    # 256-aligned (2x256^2 MXU) divisor of d_ff when possible, else 128-aligned
    # divisor, else the full d_ff slice (never read a padded weight slice).
    if d_ff % 128 == 0:
        align = 256 if (d_ff % 256 == 0 and tf >= 256) else 128
        tf = max(align, (tf // align) * align)
        while d_ff % tf:
            tf -= align
    else:
        tf = d_ff

    est = fixed + per_tf * tf + (8 << 20)
    vmem_limit = max(32 << 20, min(int(vmem_bytes * 0.9), est))

    # Third pipeline buffer on the streamed weight slices only when the model
    # shows headroom and there are enough reduction steps for it to matter.
    extra_buf = 2 * d_model * tf * compute_itemsize
    weight_buffers = 3 if (d_ff // tf >= 3 and fixed + per_tf * tf + extra_buf < budget) else 2

    return tm, tf, int(vmem_limit), weight_buffers


def feed_forward(x, w1t, w2t, *, tm=None, tf=None):
    """FeedForward forward pass: silu(x @ w1t) @ w2t (dropout in eval mode).

    x   : (batch, seq, d_model) activations; output matches x.dtype.
    w1t : (d_model, d_ff) first Linear weight, pre-transposed, already in the
          MXU compute dtype (e.g. bf16) -- one-time prep outside the hot path.
    w2t : (d_ff, d_model) second Linear weight, pre-transposed, same dtype.
    """
    batch, seq, d_model = x.shape
    d_ff = w1t.shape[1]
    assert w1t.shape == (d_model, d_ff) and w2t.shape == (d_ff, d_model)
    assert w1t.dtype == w2t.dtype
    compute_dtype = w1t.dtype
    n = batch * seq

    tm, tf, vmem_limit, wbufs = _pick_tiles(
        n, d_model, d_ff,
        jnp.dtype(x.dtype).itemsize, jnp.dtype(compute_dtype).itemsize,
        tm, tf)

    x2 = x.reshape(n, d_model)   # metadata-only; no per-call dtype converts

    # Streamed weight slices: change along the d_ff axis. Optionally 3-deep
    # buffered (only when the VMEM model showed headroom).
    if wbufs != 2:
        mode = pl.Buffered(wbufs)
        w1_spec = pl.BlockSpec((d_model, tf), lambda i, f: (0, f), pipeline_mode=mode)
        w2_spec = pl.BlockSpec((tf, d_model), lambda i, f: (f, 0), pipeline_mode=mode)
    else:
        w1_spec = pl.BlockSpec((d_model, tf), lambda i, f: (0, f))
        w2_spec = pl.BlockSpec((tf, d_model), lambda i, f: (f, 0))

    grid = (pl.cdiv(n, tm), pl.cdiv(d_ff, tf))

    kernel = functools.partial(
        _ffn_kernel,
        compute_dtype=compute_dtype,
        approx_recip=(jnp.dtype(compute_dtype) != jnp.dtype(jnp.float32)))

    out = pl.pallas_call(
        kernel,
        out_shape=jax.ShapeDtypeStruct((n, d_model), x.dtype),
        grid_spec=pltpu.PrefetchScalarGridSpec(
            num_scalar_prefetch=0,
            grid=grid,
            in_specs=[
                # row tile of activations: constant along the d_ff axis
                pl.BlockSpec((tm, d_model), lambda i, f: (i, 0)),
                w1_spec,
                w2_spec,
            ],
            # same output block across the d_ff axis -> accumulator pattern;
            # f must stay the innermost grid axis (acc is zeroed at f == 0).
            out_specs=pl.BlockSpec((tm, d_model), lambda i, f: (i, 0)),
            scratch_shapes=[pltpu.VMEM((tm, d_model), jnp.float32)],
        ),
        compiler_params=pltpu.CompilerParams(
            dimension_semantics=("parallel", "arbitrary"),
            vmem_limit_bytes=vmem_limit,
        ),
    )(x2, w1t, w2t)

    return out.reshape(batch, seq, d_model)


def feed_forward_ref(x, w1, w2):
    # PyTorch-layout weights: w1 (d_ff, d_model), w2 (d_model, d_ff).
    h = jnp.dot(x, w1.T, precision=jax.lax.Precision.HIGHEST)
    h = h * jax.nn.sigmoid(h)
    return jnp.dot(h, w2.T, precision=jax.lax.Precision.HIGHEST)


if __name__ == "__main__":
    # Small shapes consistent with the module: (batch, seq, d_model), d_ff.
    batch, seq, d_model, d_ff = 2, 8, 32, 128

    key = jax.random.PRNGKey(0)
    kx, k1, k2 = jax.random.split(key, 3)

    x = jax.random.normal(kx, (batch, seq, d_model), dtype=jnp.float32)

    # nn.Linear-style init, PyTorch weight layout (out, in).
    b1 = 1.0 / (d_model ** 0.5)
    b2 = 1.0 / (d_ff ** 0.5)
    w1 = jax.random.uniform(k1, (d_ff, d_model), jnp.float32, -b1, b1)
    w2 = jax.random.uniform(k2, (d_model, d_ff), jnp.float32, -b2, b2)

    # One-time weight prep OUTSIDE the hot path: transpose to matmul layout and
    # (for the production path) cast once to the bf16 MXU compute dtype.
    w1t_f32 = jnp.asarray(w1.T)                 # (d_model, d_ff)
    w2t_f32 = jnp.asarray(w2.T)                 # (d_ff, d_model)
    w1t_bf16 = w1t_f32.astype(jnp.bfloat16)
    w2t_bf16 = w2t_f32.astype(jnp.bfloat16)

    y_ref = feed_forward_ref(x, w1, w2)

    # f32 MXU path: tight-ish correctness check.
    y_f32 = jax.block_until_ready(feed_forward(x, w1t_f32, w2t_f32))
    assert y_f32.shape == (batch, seq, d_model)
    assert jnp.allclose(y_f32, y_ref, atol=5e-3, rtol=5e-3), "f32 mismatch vs reference"

    # bf16 MXU path (production default): loose check.
    y_bf16 = jax.block_until_ready(feed_forward(x, w1t_bf16, w2t_bf16))
    assert y_bf16.shape == (batch, seq, d_model)
    assert jnp.allclose(y_bf16, y_ref, atol=3e-2, rtol=3e-2), "bf16 mismatch vs reference"

    print("KERNEL_OK")
</pallas_src>

<mosaic_0001>
module attributes {stable_mosaic.version = 11 : i64} {
  func.func @_ffn_kernel(%arg0: i32, %arg1: i32, %arg2: memref<8x32xf32, #tpu.memory_space<vmem>>, %arg3: memref<32x128xf32, #tpu.memory_space<vmem>>, %arg4: memref<128x32xf32, #tpu.memory_space<vmem>>, %arg5: memref<8x32xf32, #tpu.memory_space<vmem>>, %arg6: memref<8x32xf32, #tpu.memory_space<vmem>>) attributes {dimension_semantics = [#tpu.dimension_semantics<parallel>, #tpu.dimension_semantics<arbitrary>], iteration_bounds = array<i64: 2, 1>, scalar_prefetch = 0 : i64, scratch_operands = 1 : i64, tpu.core_type = #tpu.core_type<tc>, window_params = [{transform_indices = @transform_0, window_bounds = array<i64: 8, 32>}, {transform_indices = @transform_1, window_bounds = array<i64: 32, 128>}, {transform_indices = @transform_2, window_bounds = array<i64: 128, 32>}, {transform_indices = @transform_3, window_bounds = array<i64: 8, 32>}]} {
    %c0_i32 = arith.constant 0 : i32
    %0 = arith.cmpi eq, %arg1, %c0_i32 : i32
    %1 = arith.extui %0 : i1 to i32
    %c0_i32_0 = arith.constant 0 : i32
    %2 = arith.cmpi ne, %1, %c0_i32_0 : i32
    scf.if %2 {
      %cst_15 = arith.constant 0.000000e+00 : f32
      %21 = vector.broadcast %cst_15 : f32 to vector<8x32xf32>
      %c0_16 = arith.constant 0 : index
      %c0_17 = arith.constant 0 : index
      %22 = vector.load %arg6[%c0_16, %c0_17] : memref<8x32xf32, #tpu.memory_space<vmem>>, vector<8x32xf32>
      tpu.vector_store %arg6[%c0_16, %c0_17], %21 {strides = array<i32>} : memref<8x32xf32, #tpu.memory_space<vmem>>, vector<8x32xf32>,
    } else {
    }
    %c0 = arith.constant 0 : index
    %c0_1 = arith.constant 0 : index
    %3 = vector.load %arg2[%c0, %c0_1] : memref<8x32xf32, #tpu.memory_space<vmem>>, vector<8x32xf32>
    %c0_2 = arith.constant 0 : index
    %c0_3 = arith.constant 0 : index
    %4 = vector.load %arg3[%c0_2, %c0_3] : memref<32x128xf32, #tpu.memory_space<vmem>>, vector<32x128xf32>
    %cst = arith.constant dense<0.000000e+00> : vector<8x128xf32>
    %5 = tpu.matmul %3, %4, %cst {dimension_numbers = #tpu.dot_dimension_numbers<[1], [0], [0], [1], [0, 0, 1, 1], [], []>} : vector<8x32xf32>, vector<32x128xf32>, vector<8x128xf32> -> vector<8x128xf32>
    %cst_4 = arith.constant 0.000000e+00 : f32
    %6 = vector.broadcast %cst_4 : f32 to vector<8x128xf32>
    %7 = arith.subf %6, %5 : vector<8x128xf32>
    %8 = math.exp %7 : vector<8x128xf32>
    %cst_5 = arith.constant 1.000000e+00 : f32
    %9 = vector.broadcast %cst_5 : f32 to vector<8x128xf32>
    %10 = arith.addf %9, %8 : vector<8x128xf32>
    %11 = tpu.reciprocal %10 : vector<8x128xf32> -> vector<8x128xf32>
    %12 = arith.mulf %5, %11 : vector<8x128xf32>
    %c0_6 = arith.constant 0 : index
    %c0_7 = arith.constant 0 : index
    %13 = vector.load %arg6[%c0_6, %c0_7] : memref<8x32xf32, #tpu.memory_space<vmem>>, vector<8x32xf32>
    %c0_8 = arith.constant 0 : index
    %c0_9 = arith.constant 0 : index
    %14 = vector.load %arg4[%c0_8, %c0_9] : memref<128x32xf32, #tpu.memory_space<vmem>>, vector<128x32xf32>
    %cst_10 = arith.constant dense<0.000000e+00> : vector<8x32xf32>
    %15 = tpu.matmul %12, %14, %cst_10 {dimension_numbers = #tpu.dot_dimension_numbers<[1], [0], [0], [1], [0, 0, 1, 1], [], []>} : vector<8x128xf32>, vector<128x32xf32>, vector<8x32xf32> -> vector<8x32xf32>
    %16 = arith.addf %13, %15 : vector<8x32xf32>
    %c0_11 = arith.constant 0 : index
    %c0_12 = arith.constant 0 : index
    %17 = vector.load %arg6[%c0_11, %c0_12] : memref<8x32xf32, #tpu.memory_space<vmem>>, vector<8x32xf32>
    tpu.vector_store %arg6[%c0_11, %c0_12], %16 {strides = array<i32>} : memref<8x32xf32, #tpu.memory_space<vmem>>, vector<8x32xf32>,
    %c0_i32_13 = arith.constant 0 : i32
    %18 = arith.cmpi eq, %arg1, %c0_i32_13 : i32
    %19 = arith.extui %18 : i1 to i32
    %c0_i32_14 = arith.constant 0 : i32
    %20 = arith.cmpi ne, %19, %c0_i32_14 : i32
    scf.if %20 {
      %c0_15 = arith.constant 0 : index
      %c0_16 = arith.constant 0 : index
      %21 = vector.load %arg6[%c0_15, %c0_16] : memref<8x32xf32, #tpu.memory_space<vmem>>, vector<8x32xf32>
      %c0_17 = arith.constant 0 : index
      %c0_18 = arith.constant 0 : index
      %22 = vector.load %arg5[%c0_17, %c0_18] : memref<8x32xf32, #tpu.memory_space<vmem>>, vector<8x32xf32>
      tpu.vector_store %arg5[%c0_17, %c0_18], %21 {strides = array<i32>} : memref<8x32xf32, #tpu.memory_space<vmem>>, vector<8x32xf32>,
    } else {
    }
    return
  }
  func.func @transform_0(%arg0: i32, %arg1: i32) -> (i32, i32) {
    %c0_i32 = arith.constant 0 : i32
    %c0_i32_0 = arith.constant 0 : i32
    return %arg0, %c0_i32 : i32, i32
  }
  func.func @transform_1(%arg0: i32, %arg1: i32) -> (i32, i32) {
    %c0_i32 = arith.constant 0 : i32
    %c0_i32_0 = arith.constant 0 : i32
    return %c0_i32, %arg1 : i32, i32
  }
  func.func @transform_2(%arg0: i32, %arg1: i32) -> (i32, i32) {
    %c0_i32 = arith.constant 0 : i32
    %c0_i32_0 = arith.constant 0 : i32
    return %arg1, %c0_i32 : i32, i32
  }
  func.func @transform_3(%arg0: i32, %arg1: i32) -> (i32, i32) {
    %c0_i32 = arith.constant 0 : i32
    %c0_i32_0 = arith.constant 0 : i32
    return %arg0, %c0_i32 : i32, i32
  }
}

</mosaic_0001>

<llo_original>
// kernel: tpu_custom_call.1
$region0: #{tpu_custom_call.1}
  #allocation0 [shape = 'u32[]', space=smem, size = 0x4, offset = 0x4, fixed_abs, tag = 'smem constant byte address 0x4 - core index']
  #allocation1 [shape = 'u32[144,128]{1,0:T(1,128)}', space=vmem, size = 0x12000, scoped, tag = 'internal scratch']
  #allocation2 [shape = 'f32[8,32]{1,0:T(8,128)}', space=vmem, size = 0x1000, scoped, tag = 'scratch operand']
  %s0 = inlined_call_operand.vmem [shape: f32[16,32], index: 0, kind: input, shape index: {}]
  %s1 = inlined_call_operand.vmem [shape: f32[32,128], index: 1, kind: input, shape index: {}]
  %s2 = inlined_call_operand.vmem [shape: f32[128,32], index: 2, kind: input, shape index: {}]
  %s3 = inlined_call_operand.hbm [shape: f32[16,32], index: 3, kind: output, shape index: {}]
  %s4 = sld [smem:[#allocation0]]
  $region53: #{tpu_custom_call.1} parent=0
    _
  %s6 = ssub.s32 1, %s4
  %s7 = scalar_select 0, %s6, %s4
  $region1: #{tpu_custom_call.1} parent=0
    #allocation3 [shape = 'u8[8192]{0}', space=vmem, size = 0x2000, scoped, tag = 'output window, operand 0']
    #allocation4 [shape = 's32[2]{0}', space=sflag, size = 0x8, scoped, tag = 'scoped memory for tpu_custom_call.1']
    %8 = vsyncpa [#allocation4], 0
    %s9 = scalar_lea.sflag [#allocation4], 1
    %10 = vsyncpa %s9, 0
    loop: start=0, step=1, limit=4
    $region2: #{tpu_custom_call.1} parent=1 // loop_pre_header
      _
    $region3: #{tpu_custom_call.1} parent=1 // loop_header
      %s12 = sphi 0, %s16
      %p13 = scmp.ge.s32.totalorder %s12, 4
      %s19 = sphi 0, %s31
      %s20 = sphi 0, %s27
      %s21 = sphi 0, %s19
      %s22 = sphi 0, %s20
      %s23 = sphi 0, %s21
      %s24 = sphi 0, %s22
      %s34 = sphi 0, %s36
      %s37 = sphi 0, %s34
      %s38 = sphi 0, %s37
      %s54 = sphi 0, %s38
      %s60 = sphi 0, %s62
      %s63 = sphi 0, %s60
      %s64 = sphi 0, %s63
      %s80 = sphi 0, %s64
      %s86 = sphi 0, %s88
      %s89 = sphi 0, %s86
      %s90 = sphi 0, %s89
      %s106 = sphi 0, %s90
      %s112 = sphi 0, %s114
      %s115 = sphi 0, %s112
      %s116 = sphi 0, %s115
      %s132 = sphi 0, %s116
    $region4: #{tpu_custom_call.1} parent=1 // loop_header_branch
      %15 = sbr.rel (%p13) target = $region8
    $region5: #{tpu_custom_call.1} parent=1 // loop_body
      %s17 = ssub.s32 %s12, 1
      %s18 = ssub.s32 %s12, 2
      %s25 = sadd.s32 1, %s20
      %p26 = scmp.ge.s32.totalorder %s25, 1
      %s27 = scalar_select %p26, 0, %s25
      %s28 = sadd.s32 1, %s19
      %s29 = scalar_select %p26, %s28, %s19
      %p30 = scmp.ge.s32.totalorder %s29, 2
      %s31 = scalar_select %p30, 0, %s29
      %s32 = ssub.s32 %s19, %s31
      %p33 = scmp.eq.s32.totalorder %s32, 0
      %s35 = sadd.s32 %s34, 1
      %s36 = scalar_select %p33, %s34, %s35
      %p39 = pneg %p33
      %p40 = scmp.eq.s32.totalorder %s12, 1
      %p41 = por %p39, %p40
      %p42 = scmp.ne.s32.totalorder %s34, %s37
      %p43 = scmp.eq.s32.totalorder %s12, 0
      %p44 = por %p42, %p43
      %p45 = scmp.ne.s32.totalorder %s34, %s37
      %p46 = scmp.eq.s32.totalorder %s17, 1
      %p47 = por %p45, %p46
      %p48 = scmp.ne.s32.totalorder %s37, %s38
      %p49 = scmp.eq.s32.totalorder %s17, 0
      %p50 = por %p48, %p49
      %p51 = scmp.ne.s32.totalorder %s37, %s38
      %p52 = scmp.eq.s32.totalorder %s18, 1
      %p53 = por %p51, %p52
      %p55 = scmp.ne.s32.totalorder %s38, %s54
      %p56 = scmp.eq.s32.totalorder %s18, 0
      %p57 = por %p55, %p56
      %s58 = ssub.s32 %s20, %s27
      %p59 = scmp.eq.s32.totalorder %s58, 0
      %s61 = sadd.s32 %s60, 1
      %s62 = scalar_select %p59, %s60, %s61
      %p65 = pneg %p59
      %p66 = scmp.eq.s32.totalorder %s12, 1
      %p67 = por %p65, %p66
      %p68 = scmp.ne.s32.totalorder %s60, %s63
      %p69 = scmp.eq.s32.totalorder %s12, 0
      %p70 = por %p68, %p69
      %p71 = scmp.ne.s32.totalorder %s60, %s63
      %p72 = scmp.eq.s32.totalorder %s17, 1
      %p73 = por %p71, %p72
      %p74 = scmp.ne.s32.totalorder %s63, %s64
      %p75 = scmp.eq.s32.totalorder %s17, 0
      %p76 = por %p74, %p75
      %p77 = scmp.ne.s32.totalorder %s63, %s64
      %p78 = scmp.eq.s32.totalorder %s18, 1
      %p79 = por %p77, %p78
      %p81 = scmp.ne.s32.totalorder %s64, %s80
      %p82 = scmp.eq.s32.totalorder %s18, 0
      %p83 = por %p81, %p82
      %s84 = ssub.s32 %s20, %s27
      %p85 = scmp.eq.s32.totalorder %s84, 0
      %s87 = sadd.s32 %s86, 1
      %s88 = scalar_select %p85, %s86, %s87
      %p91 = pneg %p85
      %p92 = scmp.eq.s32.totalorder %s12, 1
      %p93 = por %p91, %p92
      %p94 = scmp.ne.s32.totalorder %s86, %s89
      %p95 = scmp.eq.s32.totalorder %s12, 0
      %p96 = por %p94, %p95
      %p97 = scmp.ne.s32.totalorder %s86, %s89
      %p98 = scmp.eq.s32.totalorder %s17, 1
      %p99 = por %p97, %p98
      %p100 = scmp.ne.s32.totalorder %s89, %s90
      %p101 = scmp.eq.s32.totalorder %s17, 0
      %p102 = por %p100, %p101
      %p103 = scmp.ne.s32.totalorder %s89, %s90
      %p104 = scmp.eq.s32.totalorder %s18, 1
      %p105 = por %p103, %p104
      %p107 = scmp.ne.s32.totalorder %s90, %s106
      %p108 = scmp.eq.s32.totalorder %s18, 0
      %p109 = por %p107, %p108
      %s110 = ssub.s32 %s19, %s31
      %p111 = scmp.eq.s32.totalorder %s110, 0
      %s113 = sadd.s32 %s112, 1
      %s114 = scalar_select %p111, %s112, %s113
      %p117 = pneg %p111
      %p118 = scmp.eq.s32.totalorder %s12, 1
      %p119 = por %p117, %p118
      %p120 = scmp.ne.s32.totalorder %s112, %s115
      %p121 = scmp.eq.s32.totalorder %s12, 0
      %p122 = por %p120, %p121
      %p123 = scmp.ne.s32.totalorder %s112, %s115
      %p124 = scmp.eq.s32.totalorder %s17, 1
      %p125 = por %p123, %p124
      %p126 = scmp.ne.s32.totalorder %s115, %s116
      %p127 = scmp.eq.s32.totalorder %s17, 0
      %p128 = por %p126, %p127
      %p129 = scmp.ne.s32.totalorder %s115, %s116
      %p130 = scmp.eq.s32.totalorder %s18, 1
      %p131 = por %p129, %p130
      %p133 = scmp.ne.s32.totalorder %s116, %s132
      %p134 = scmp.eq.s32.totalorder %s18, 0
      %p135 = por %p133, %p134
      %p136 = scmp.le.s32.totalorder 1, %s12
      %p137 = scmp.lt.s32.totalorder %s12, 3
      %p138 = pnand %p136, %p137
      %p139 = pneg %p138
      // Predicated region
      $region9: #{tpu_custom_call.1} parent=5 // pred_check
        _
      $region10: #{tpu_custom_call.1} parent=5 // pred_check_branch
        %141 = sbr.rel (%p138) target = $region12
      $region11: #{tpu_custom_call.1} parent=5 // pred_region
        %s142 = ssub.s32 %s12, 1
        // Predicated region
        $region13: #{tpu_custom_call.1} parent=11 // pred_check
          %p143 = pneg %p76
        $region14: #{tpu_custom_call.1} parent=11 // pred_check_branch
          %145 = sbr.rel (%p143) target = $region16
        $region15: #{tpu_custom_call.1} parent=11 // pred_region
          %p146 = scmp.lt.s32.totalorder %s22, 0
          %s147 = scalar_select %p146, %s22, 0
          %s148 = smul.addr %s147, 8
          %s149 = scalar_lea.vmem %s1, %s148
        $region16: #{tpu_custom_call.1} parent=11 // pred_fallthru
          _
        // Predicated region
        $region17: #{tpu_custom_call.1} parent=11 // pred_check
          %p150 = pneg %p102
        $region18: #{tpu_custom_call.1} parent=11 // pred_check_branch
          %152 = sbr.rel (%p150) target = $region20
        $region19: #{tpu_custom_call.1} parent=11 // pred_region
          %s153 = smul.u32 16, %s22
          %p154 = scmp.lt.s32.totalorder %s153, 15
          %s155 = scalar_select %p154, %s153, 15
          %s156 = smul.addr %s155, 8
          %s157 = scalar_lea.vmem %s2, %s156
          %s158 = smul.u32 16, %s22
        $region20: #{tpu_custom_call.1} parent=11 // pred_fallthru
          _
      $region12: #{tpu_custom_call.1} parent=5 // pred_fallthru
        _
      %p159 = scmp.lt.s32.totalorder %s12, 2
      // Predicated region
      $region21: #{tpu_custom_call.1} parent=5 // pred_check
        %p160 = pneg %p159
      $region22: #{tpu_custom_call.1} parent=5 // pred_check_branch
        %162 = sbr.rel (%p160) target = $region24
      $region23: #{tpu_custom_call.1} parent=5 // pred_region
        // Predicated region
        $region25: #{tpu_custom_call.1} parent=23 // pred_check
          %p163 = pneg %p44
        $region26: #{tpu_custom_call.1} parent=23 // pred_check_branch
          %165 = sbr.rel (%p163) target = $region28
        $region27: #{tpu_custom_call.1} parent=23 // pred_region
          %p166 = scmp.lt.s32.totalorder %s19, 1
          %s167 = scalar_select %p166, %s19, 1
          %s168 = smul.addr %s167, 8
          %s169 = scalar_lea.vmem %s0, %s168
        $region28: #{tpu_custom_call.1} parent=23 // pred_fallthru
          _
      $region24: #{tpu_custom_call.1} parent=5 // pred_fallthru
        _
      %p170 = scmp.le.s32.totalorder 1, %s12
      %p171 = scmp.lt.s32.totalorder %s12, 3
      %p172 = pnand %p170, %p171
      %p173 = pneg %p172
      // Predicated region
      $region29: #{tpu_custom_call.1} parent=5 // pred_check
        _
      $region30: #{tpu_custom_call.1} parent=5 // pred_check_branch
        %175 = sbr.rel (%p172) target = $region32
      $region31: #{tpu_custom_call.1} parent=5 // pred_region
        %s176 = ssub.s32 %s12, 1
        %p177 = scmp.lt.s32.totalorder %s21, 1
        %s178 = scalar_select %p177, %s21, 1
        %s179 = smul.addr %s178, 8
        %s180 = scalar_lea.vmem %s0, %s179
        %p181 = pneg %p50
        %p182 = pneg %p47
        %p183 = scmp.lt.s32.totalorder %s22, 0
        %s184 = scalar_select %p183, %s22, 0
        %s185 = smul.addr %s184, 8
        %s186 = scalar_lea.vmem %s1, %s185
        %p187 = pneg %p76
        %p188 = pneg %p73
        %s189 = smul.u32 16, %s22
        %p190 = scmp.lt.s32.totalorder %s189, 15
        %s191 = scalar_select %p190, %s189, 15
        %s192 = smul.addr %s191, 8
        %s193 = scalar_lea.vmem %s2, %s192
        %p194 = pneg %p102
        %p195 = pneg %p99
        %p196 = pneg %p128
        %p197 = pneg %p125
        %s198 = sand.u32 %s115, 1
        %s199 = scalar_lea.sflag [#allocation4], %s198
        %s200 = sand.u32 %s115, 1
        %s201 = smul.addr %s200, 8
        %s202 = scalar_lea.vmem [#allocation3], %s201
        %p203 = scmp.lt.s32.totalorder %s21, 1
        %s204 = scalar_select %p203, %s21, 1
        %s205 = smul.addr %s204, 8
        %s206 = scalar_lea.vmem %s0, %s205
        %p207 = scmp.lt.s32.totalorder %s22, 0
        %s208 = scalar_select %p207, %s22, 0
        %s209 = smul.addr %s208, 8
        %s210 = scalar_lea.vmem %s1, %s209
        %s211 = smul.u32 16, %s22
        %p212 = scmp.lt.s32.totalorder %s211, 15
        %s213 = scalar_select %p212, %s211, 15
        %s214 = smul.addr %s213, 8
        %s215 = scalar_lea.vmem %s2, %s214
        %s216 = smul.u32 16, %s22
        %p217 = scmp.eq.s32.totalorder %s22, 0
        // Predicated region
        $region33: #{tpu_custom_call.1} parent=31 // pred_check
          %p218 = pneg %p217
        $region34: #{tpu_custom_call.1} parent=31 // pred_check_branch
          %220 = sbr.rel (%p218) target = $region36
        $region35: #{tpu_custom_call.1} parent=31 // pred_region
          %vm221 = vcmask 261120
          %222 = vst.msk [vmem:[#allocation2] sm:$0xff] %vm221, 0.0
        $region36: #{tpu_custom_call.1} parent=31 // pred_fallthru
          _
        %v223 = vld [vmem:[%s206] sm:$0xff]
        %v224 = vld [vmem:[%s210] sm:$0xff]
        %v225 = vld [vmem:[%s210 + $0x8] sm:$0xff]
        %v226 = vld [vmem:[%s210 + $0x10] sm:$0xff]
        %v227 = vld [vmem:[%s210 + $0x18] sm:$0xff]
        %vm228 = vcmask 261120
        %v230 = vsel %vm228, %v223, 0
        %232 = vmatprep.subr.mxu0 0.0
        %233 = vmatpush1.msra.mxu0 0.0
        %234 = vmatprep.subr.mxu0 0.0
        %235 = vmatpush1.msra.mxu0 0.0
        %236 = vmatprep.subr.mxu0 0.0
        %237 = vmatpush1.msra.mxu0 0.0
        %238 = vmatprep.subr.mxu0 0.0
        %239 = vmatpush1.msra.mxu0 0.0
        %240 = vmatprep.subr.mxu0 0.0
        %241 = vmatpush1.msra.mxu0 0.0
        %242 = vmatprep.subr.mxu0 0.0
        %243 = vmatpush1.msra.mxu0 0.0
        %244 = vmatprep.subr.mxu0 0.0
        %245 = vmatpush1.msra.mxu0 0.0
        %246 = vmatprep.subr.mxu0 0.0
        %247 = vmatpush1.msra.mxu0 0.0
        %248 = vmatprep.subr.mxu0 0.0
        %249 = vmatpush1.msra.mxu0 0.0
        %250 = vmatprep.subr.mxu0 0.0
        %251 = vmatpush1.msra.mxu0 0.0
        %252 = vmatprep.subr.mxu0 0.0
        %253 = vmatpush1.msra.mxu0 0.0
        %254 = vmatprep.subr.mxu0 0.0
        %255 = vmatpush1.msra.mxu0 0.0
        %256 = vmatprep.subr.mxu0 0.0
        %257 = vmatpush1.msra.mxu0 %v227
        %258 = vmatprep.subr.mxu0 0.0
        %259 = vmatpush1.msra.mxu0 %v226
        %260 = vmatprep.subr.mxu0 0.0
        %261 = vmatpush1.msra.mxu0 %v225
        %262 = vmatprep.subr.mxu0 0.0
        %263 = vmatpush1.msra.mxu0 %v224
        %264 = vmatprep.subr.mxu0 0.0
        %265 = vmatpush2.msra.mxu0 0.0
        %266 = vmatprep.subr.mxu0 0.0
        %267 = vmatpush2.msra.mxu0 0.0
        %268 = vmatprep.subr.mxu0 0.0
        %269 = vmatpush2.msra.mxu0 0.0
        %270 = vmatprep.subr.mxu0 0.0
        %271 = vmatpush2.msra.mxu0 0.0
        %272 = vmatprep.subr.mxu0 0.0
        %273 = vmatpush2.msra.mxu0 0.0
        %274 = vmatprep.subr.mxu0 0.0
        %275 = vmatpush2.msra.mxu0 0.0
        %276 = vmatprep.subr.mxu0 0.0
        %277 = vmatpush2.msra.mxu0 0.0
        %278 = vmatprep.subr.mxu0 0.0
        %279 = vmatpush2.msra.mxu0 0.0
        %280 = vmatprep.subr.mxu0 0.0
        %281 = vmatpush2.msra.mxu0 0.0
        %282 = vmatprep.subr.mxu0 0.0
        %283 = vmatpush2.msra.mxu0 0.0
        %284 = vmatprep.subr.mxu0 0.0
        %285 = vmatpush2.msra.mxu0 0.0
        %286 = vmatprep.subr.mxu0 0.0
        %287 = vmatpush2.msra.mxu0 0.0
        %288 = vmatprep.subr.mxu0 0.0
        %289 = vmatpush2.msra.mxu0 0.0
        %290 = vmatprep.subr.mxu0 0.0
        %291 = vmatpush2.msra.mxu0 0.0
        %292 = vmatprep.subr.mxu0 0.0
        %293 = vmatpush2.msra.mxu0 0.0
        %294 = vmatprep.subr.mxu0 0.0
        %295 = vmatpush2.msra.mxu0 0.0
        %296 = vmatprep.mubr.f32.mxu0 0.0
        %297 = vmatmul.mubr.f32.gmra.mxu0 %v230
        %v298 = vpop.f32.mrf.mxu0
        %v299 = vadd.f32 0.0, %v298
        %v300 = vpop.f32.mrf.mxu0
        %301 = vdwg.mxu0
        %v302 = vsub.f32 0.0, %v299
        %v303 = vmul.f32 %v302, 1.442695
        %v304 = vpow.pop %v303
        %v305 = vadd.f32 %v304, 1.0
        %v306 = vrcp.pop %v305
        %v307 = vmul.f32 %v299, %v306
        %v308 = vld [vmem:[#allocation2] sm:$0xff]
        %v309 = vld [vmem:[%s215] sm:$0xff]
        %v310 = vld [vmem:[%s215 + $0x8] sm:$0xff]
        %v311 = vld [vmem:[%s215 + $0x10] sm:$0xff]
        %v312 = vld [vmem:[%s215 + $0x18] sm:$0xff]
        %v313 = vld [vmem:[%s215 + $0x20] sm:$0xff]
        %v314 = vld [vmem:[%s215 + $0x28] sm:$0xff]
        %v315 = vld [vmem:[%s215 + $0x30] sm:$0xff]
        %v316 = vld [vmem:[%s215 + $0x38] sm:$0xff]
        %v317 = vld [vmem:[%s215 + $0x40] sm:$0xff]
        %v318 = vld [vmem:[%s215 + $0x48] sm:$0xff]
        %v319 = vld [vmem:[%s215 + $0x50] sm:$0xff]
        %v320 = vld [vmem:[%s215 + $0x58] sm:$0xff]
        %v321 = vld [vmem:[%s215 + $0x60] sm:$0xff]
        %v322 = vld [vmem:[%s215 + $0x68] sm:$0xff]
        %v323 = vld [vmem:[%s215 + $0x70] sm:$0xff]
        %v324 = vld [vmem:[%s215 + $0x78] sm:$0xff]
        %325 = vmatprep.subr.mxu0 0.0
        %326 = vmatpush1.msra.mxu0 %v324
        %327 = vmatprep.subr.mxu0 0.0
        %328 = vmatpush1.msra.mxu0 %v323
        %329 = vmatprep.subr.mxu0 0.0
        %330 = vmatpush1.msra.mxu0 %v322
        %331 = vmatprep.subr.mxu0 0.0
        %332 = vmatpush1.msra.mxu0 %v321
        %333 = vmatprep.subr.mxu0 0.0
        %334 = vmatpush1.msra.mxu0 %v320
        %335 = vmatprep.subr.mxu0 0.0
        %336 = vmatpush1.msra.mxu0 %v319
        %337 = vmatprep.subr.mxu0 0.0
        %338 = vmatpush1.msra.mxu0 %v318
        %339 = vmatprep.subr.mxu0 0.0
        %340 = vmatpush1.msra.mxu0 %v317
        %341 = vmatprep.subr.mxu0 0.0
        %342 = vmatpush1.msra.mxu0 %v316
        %343 = vmatprep.subr.mxu0 0.0
        %344 = vmatpush1.msra.mxu0 %v315
        %345 = vmatprep.subr.mxu0 0.0
        %346 = vmatpush1.msra.mxu0 %v314
        %347 = vmatprep.subr.mxu0 0.0
        %348 = vmatpush1.msra.mxu0 %v313
        %349 = vmatprep.subr.mxu0 0.0
        %350 = vmatpush1.msra.mxu0 %v312
        %351 = vmatprep.subr.mxu0 0.0
        %352 = vmatpush1.msra.mxu0 %v311
        %353 = vmatprep.subr.mxu0 0.0
        %354 = vmatpush1.msra.mxu0 %v310
        %355 = vmatprep.subr.mxu0 0.0
        %356 = vmatpush1.msra.mxu0 %v309
        %357 = vmatprep.subr.mxu0 0.0
        %358 = vmatpush2.msra.mxu0 0.0
        %359 = vmatprep.subr.mxu0 0.0
        %360 = vmatpush2.msra.mxu0 0.0
        %361 = vmatprep.subr.mxu0 0.0
        %362 = vmatpush2.msra.mxu0 0.0
        %363 = vmatprep.subr.mxu0 0.0
        %364 = vmatpush2.msra.mxu0 0.0
        %365 = vmatprep.subr.mxu0 0.0
        %366 = vmatpush2.msra.mxu0 0.0
        %367 = vmatprep.subr.mxu0 0.0
        %368 = vmatpush2.msra.mxu0 0.0
        %369 = vmatprep.subr.mxu0 0.0
        %370 = vmatpush2.msra.mxu0 0.0
        %371 = vmatprep.subr.mxu0 0.0
        %372 = vmatpush2.msra.mxu0 0.0
        %373 = vmatprep.subr.mxu0 0.0
        %374 = vmatpush2.msra.mxu0 0.0
        %375 = vmatprep.subr.mxu0 0.0
        %376 = vmatpush2.msra.mxu0 0.0
        %377 = vmatprep.subr.mxu0 0.0
        %378 = vmatpush2.msra.mxu0 0.0
        %379 = vmatprep.subr.mxu0 0.0
        %380 = vmatpush2.msra.mxu0 0.0
        %381 = vmatprep.subr.mxu0 0.0
        %382 = vmatpush2.msra.mxu0 0.0
        %383 = vmatprep.subr.mxu0 0.0
        %384 = vmatpush2.msra.mxu0 0.0
        %385 = vmatprep.subr.mxu0 0.0
        %386 = vmatpush2.msra.mxu0 0.0
        %387 = vmatprep.subr.mxu0 0.0
        %388 = vmatpush2.msra.mxu0 0.0
        %389 = vmatprep.mubr.f32.mxu0 0.0
        %390 = vmatmul.mubr.f32.gmra.mxu0 %v307
        %v391 = vpop.f32.mrf.mxu0
        %v392 = vadd.f32 0.0, %v391
        %v393 = vpop.f32.mrf.mxu0
        %394 = vdwg.mxu0
        %v395 = vadd.f32 %v308, %v392
        %396 = vst.msk [vmem:[#allocation2] sm:$0xff] %vm228, %v395
        // Predicated region
        $region37: #{tpu_custom_call.1} parent=31 // pred_check
          %p397 = pneg %p217
        $region38: #{tpu_custom_call.1} parent=31 // pred_check_branch
          %399 = sbr.rel (%p397) target = $region40
        $region39: #{tpu_custom_call.1} parent=31 // pred_region
          %v400 = vld [vmem:[#allocation2] sm:$0xff]
          %401 = vst.msk [vmem:[%s202] sm:$0xff] %vm228, %v400
        $region40: #{tpu_custom_call.1} parent=31 // pred_fallthru
          _
        %s402 = sand.u32 %s115, 1
        %s403 = scalar_lea.sflag [#allocation4], %s402
        %s404 = sand.u32 %s115, 1
        %s405 = smul.addr %s404, 8
        %s406 = scalar_lea.vmem [#allocation3], %s405
        // Predicated region
        $region41: #{tpu_custom_call.1} parent=31 // pred_check
          %p407 = pneg %p125
        $region42: #{tpu_custom_call.1} parent=31 // pred_check_branch
          %409 = sbr.rel (%p407) target = $region44
        $region43: #{tpu_custom_call.1} parent=31 // pred_region
          %s411 = ssub.s32 128, 128
          %412 = vsyncadd %s403, %s411
          %s413 = smul.addr %s21, 128
          %s414 = scalar_lea.hbm %s3, %s413
          %s416 = sshll.u32 %s406, 4
          %s417 = int_to_ptr.vmem [resolvable:$true] %s416
          %419 = dma.vmem_to_hbm [thread:$0]  %s417, 128, %s414, %s403
        $region44: #{tpu_custom_call.1} parent=31 // pred_fallthru
          _
      $region32: #{tpu_custom_call.1} parent=5 // pred_fallthru
        _
      %p420 = scmp.le.s32.totalorder 2, %s12
      // Predicated region
      $region45: #{tpu_custom_call.1} parent=5 // pred_check
        %p421 = pneg %p420
      $region46: #{tpu_custom_call.1} parent=5 // pred_check_branch
        %423 = sbr.rel (%p421) target = $region48
      $region47: #{tpu_custom_call.1} parent=5 // pred_region
        %s424 = ssub.s32 %s12, 2
        // Predicated region
        $region49: #{tpu_custom_call.1} parent=47 // pred_check
          %p425 = pneg %p131
        $region50: #{tpu_custom_call.1} parent=47 // pred_check_branch
          %427 = sbr.rel (%p425) target = $region52
        $region51: #{tpu_custom_call.1} parent=47 // pred_region
          %s428 = sand.u32 %s116, 1
          %s429 = scalar_lea.sflag [#allocation4], %s428
          %s430 = sand.u32 %s116, 1
          %s431 = smul.addr %s430, 8
          %s432 = scalar_lea.vmem [#allocation3], %s431
          %433 = dma.done %s429, 128
        $region52: #{tpu_custom_call.1} parent=47 // pred_fallthru
          _
      $region48: #{tpu_custom_call.1} parent=5 // pred_fallthru
        _
    $region6: #{tpu_custom_call.1} parent=1 // loop_footer
      %s16 = sadd.s32 1, %s12
    $region7: #{tpu_custom_call.1} parent=1 // loop_footer_branch
      %11 = sbr.rel target = $region3
    $region8: #{tpu_custom_call.1} parent=1 // loop_exit
      _
    %434 = vsyncpa [#allocation4], 1
    %s435 = scalar_lea.sflag [#allocation4], 1
    %436 = vsyncpa %s435, 1

</llo_original>
